<compile_context>
chip_gen: v5e
topology: v5e:2x2
jax: 0.10.0
libtpu: 0.0.40
codegen_flags: <defaults>
</compile_context>

<pallas_src>
import functools

import jax
import jax.numpy as jnp
from jax.experimental import pallas as pl
from jax.experimental.pallas import tpu as pltpu


def _lstm_cell_kernel(xh_ref, c_ref, w_ref, b_ref, hc_ref, *, num_features):
    F = num_features
    # One fused MXU matmul: (tile, 2F) @ (2F, 4F) -> lane-dense (tile, 4F) gates.
    gates = (
        jnp.dot(xh_ref[...], w_ref[...], preferred_element_type=jnp.float32)
        + b_ref[...]
    )
    # One lane-dense sigmoid pass over the whole gate slab (i, f, _, o used).
    sig = jax.nn.sigmoid(gates)
    i_g = sig[:, 0 * F:1 * F]
    f_g = sig[:, 1 * F:2 * F]
    o_g = sig[:, 3 * F:4 * F]
    g_g = jnp.tanh(gates[:, 2 * F:3 * F])

    c_new = f_g * c_ref[...].astype(jnp.float32) + i_g * g_g
    h_new = o_g * jnp.tanh(c_new)

    # Single merged (tile, 2F) output slab: [h' | c'].
    hc_ref[...] = jnp.concatenate([h_new, c_new], axis=-1).astype(hc_ref.dtype)


def lstm_cell_forward(x, memory, w_ih, w_hh, b_ih, b_hh, *, tile_b=512):
    """Pallas LSTMCell forward. Returns (h_new, (h_new, c_new)) like the module."""
    h, c = memory
    batch, F = x.shape
    assert w_ih.shape == (4 * F, F) and w_hh.shape == (4 * F, F)

    # Pre-pack weights -> (2F, 4F) so a single matmul on [x|h] yields lane-dense
    # gates; merge biases once (exact).
    w_cat = jnp.concatenate([w_ih.T, w_hh.T], axis=0)            # (2F, 4F)
    bias = (b_ih + b_hh).reshape(1, 4 * F).astype(jnp.float32)   # (1, 4F)

    # --- batch tiling -------------------------------------------------------
    sub = 8                                    # f32 sublane granularity
    padded_b = max(sub, ((batch + sub - 1) // sub) * sub)
    tile = min(tile_b, padded_b)
    # Give the "parallel" grid axis >= 2 steps when there is enough batch, so
    # multi-TensorCore chips (v7x) can shard it.
    if padded_b >= 2 * sub and 2 * tile > padded_b:
        tile = ((padded_b // 2 + sub - 1) // sub) * sub
    tile = max(sub, (tile // sub) * sub)
    grid_b = pl.cdiv(padded_b, tile)
    padded_b = grid_b * tile                   # pad batch UP to a tile multiple

    def pad_rows(a):
        if a.shape[0] == padded_b:
            return a
        return jnp.pad(a, ((0, padded_b - a.shape[0]), (0, 0)))

    xh = pad_rows(jnp.concatenate([x, h], axis=1))   # (padded_b, 2F) fused operand
    c_p = pad_rows(c)                                # (padded_b, F)

    kernel = functools.partial(_lstm_cell_kernel, num_features=F)

    hc = pl.pallas_call(
        kernel,
        out_shape=jax.ShapeDtypeStruct((padded_b, 2 * F), x.dtype),
        grid_spec=pltpu.PrefetchScalarGridSpec(
            num_scalar_prefetch=0,
            grid=(grid_b,),
            in_specs=[
                pl.BlockSpec((tile, 2 * F), lambda i: (i, 0)),     # [x | h]
                pl.BlockSpec((tile, F), lambda i: (i, 0)),         # c
                pl.BlockSpec((2 * F, 4 * F), lambda i: (0, 0)),    # packed weights (resident)
                pl.BlockSpec((1, 4 * F), lambda i: (0, 0)),        # merged bias   (resident)
            ],
            out_specs=pl.BlockSpec((tile, 2 * F), lambda i: (i, 0)),  # [h' | c']
        ),
        compiler_params=pltpu.CompilerParams(
            dimension_semantics=("parallel",),
        ),
    )(xh, c_p, w_cat, bias)

    h_new = hc[:batch, :F]
    c_new = hc[:batch, F:]
    return h_new, (h_new, c_new)


# --- Pure-JAX helpers mirroring the module's non-forward methods -------------
def zero_memory(batch_size, num_features, dtype=jnp.float32):
    zeros = jnp.zeros((batch_size, num_features), dtype=dtype)
    return (zeros, zeros)


def reset_memory(memory, done):
    done = done[:, None]
    return tuple(jnp.where(done, jnp.zeros_like(x), x) for x in memory)
# TODO(synk): detach_memory is an autograd concept; use jax.lax.stop_gradient
# on each memory element when needed (no in-kernel equivalent).


def _lstm_ref(x, memory, w_ih, w_hh, b_ih, b_hh):
    h, c = memory
    gates = x @ w_ih.T + b_ih + h @ w_hh.T + b_hh
    i, f, g, o = jnp.split(gates, 4, axis=-1)
    c_new = jax.nn.sigmoid(f) * c + jax.nn.sigmoid(i) * jnp.tanh(g)
    h_new = jax.nn.sigmoid(o) * jnp.tanh(c_new)
    return h_new, (h_new, c_new)


if __name__ == "__main__":
    num_features = 32
    batch = 2

    key = jax.random.PRNGKey(0)
    k = jax.random.split(key, 7)
    bound = 1.0 / (num_features ** 0.5)  # PyTorch LSTMCell init: U(-1/sqrt(F), 1/sqrt(F))
    w_ih = jax.random.uniform(k[0], (4 * num_features, num_features), jnp.float32, -bound, bound)
    w_hh = jax.random.uniform(k[1], (4 * num_features, num_features), jnp.float32, -bound, bound)
    b_ih = jax.random.uniform(k[2], (4 * num_features,), jnp.float32, -bound, bound)
    b_hh = jax.random.uniform(k[3], (4 * num_features,), jnp.float32, -bound, bound)

    x = jax.random.normal(k[4], (batch, num_features), dtype=jnp.float32)
    h0 = jax.random.normal(k[5], (batch, num_features), dtype=jnp.float32)
    c0 = jax.random.normal(k[6], (batch, num_features), dtype=jnp.float32)
    memory = (h0, c0)

    out, (h_new, c_new) = lstm_cell_forward(x, memory, w_ih, w_hh, b_ih, b_hh)
    out = jax.block_until_ready(out)

    ref_out, (ref_h, ref_c) = _lstm_ref(x, memory, w_ih, w_hh, b_ih, b_hh)
    assert out.shape == (batch, num_features), out.shape
    assert jnp.allclose(out, ref_out, atol=1e-5, rtol=1e-5), "h mismatch vs reference"
    assert jnp.allclose(h_new, ref_h, atol=1e-5, rtol=1e-5), "h (memory) mismatch"
    assert jnp.allclose(c_new, ref_c, atol=1e-5, rtol=1e-5), "c mismatch vs reference"

    # Also sanity-check a larger batch that exercises multi-step grid + padding.
    batch2 = 300
    kk = jax.random.split(jax.random.PRNGKey(1), 3)
    x2 = jax.random.normal(kk[0], (batch2, num_features), dtype=jnp.float32)
    h2 = jax.random.normal(kk[1], (batch2, num_features), dtype=jnp.float32)
    c2 = jax.random.normal(kk[2], (batch2, num_features), dtype=jnp.float32)
    out2, (h2n, c2n) = lstm_cell_forward(x2, (h2, c2), w_ih, w_hh, b_ih, b_hh)
    out2 = jax.block_until_ready(out2)
    r_out2, (r_h2, r_c2) = _lstm_ref(x2, (h2, c2), w_ih, w_hh, b_ih, b_hh)
    assert jnp.allclose(out2, r_out2, atol=1e-5, rtol=1e-5), "large-batch h mismatch"
    assert jnp.allclose(c2n, r_c2, atol=1e-5, rtol=1e-5), "large-batch c mismatch"

    # Exercise the zero/reset memory helpers (pure JAX, outside the kernel).
    zm = zero_memory(batch, num_features)
    assert jnp.allclose(zm[0], 0.0) and jnp.allclose(zm[1], 0.0)
    done = jnp.array([True, False])
    rm = reset_memory(memory, done)
    assert jnp.allclose(rm[0][0], 0.0) and jnp.allclose(rm[1][0], 0.0)
    assert jnp.allclose(rm[0][1], h0[1]) and jnp.allclose(rm[1][1], c0[1])

    print("KERNEL_OK")
</pallas_src>

<mosaic_0001>
module attributes {stable_mosaic.version = 11 : i64} {
  func.func @_lstm_cell_kernel(%arg0: i32, %arg1: memref<8x64xf32, #tpu.memory_space<vmem>>, %arg2: memref<8x32xf32, #tpu.memory_space<vmem>>, %arg3: memref<64x128xf32, #tpu.memory_space<vmem>>, %arg4: memref<1x128xf32, #tpu.memory_space<vmem>>, %arg5: memref<8x64xf32, #tpu.memory_space<vmem>>) attributes {dimension_semantics = [#tpu.dimension_semantics<parallel>], iteration_bounds = array<i64: 1>, scalar_prefetch = 0 : i64, scratch_operands = 0 : i64, tpu.core_type = #tpu.core_type<tc>, window_params = [{transform_indices = @transform_0, window_bounds = array<i64: 8, 64>}, {transform_indices = @transform_1, window_bounds = array<i64: 8, 32>}, {pipeline_mode = #tpu.pipeline_mode<synchronous>, transform_indices = @transform_2, window_bounds = array<i64: 64, 128>}, {pipeline_mode = #tpu.pipeline_mode<synchronous>, transform_indices = @transform_3, window_bounds = array<i64: 1, 128>}, {transform_indices = @transform_4, window_bounds = array<i64: 8, 64>}]} {
    %c0 = arith.constant 0 : index
    %c0_0 = arith.constant 0 : index
    %0 = vector.load %arg1[%c0, %c0_0] : memref<8x64xf32, #tpu.memory_space<vmem>>, vector<8x64xf32>
    %c0_1 = arith.constant 0 : index
    %c0_2 = arith.constant 0 : index
    %1 = vector.load %arg3[%c0_1, %c0_2] : memref<64x128xf32, #tpu.memory_space<vmem>>, vector<64x128xf32>
    %cst = arith.constant dense<0.000000e+00> : vector<8x128xf32>
    %2 = tpu.matmul %0, %1, %cst {dimension_numbers = #tpu.dot_dimension_numbers<[1], [0], [0], [1], [0, 0, 1, 1], [], []>} : vector<8x64xf32>, vector<64x128xf32>, vector<8x128xf32> -> vector<8x128xf32>
    %c0_3 = arith.constant 0 : index
    %c0_4 = arith.constant 0 : index
    %3 = vector.load %arg4[%c0_3, %c0_4] : memref<1x128xf32, #tpu.memory_space<vmem>>, vector<1x128xf32>
    %4 = vector.broadcast %3 : vector<1x128xf32> to vector<8x128xf32>
    %5 = arith.addf %2, %4 : vector<8x128xf32>
    %6 = arith.negf %5 : vector<8x128xf32>
    %7 = math.exp %6 : vector<8x128xf32>
    %cst_5 = arith.constant 1.000000e+00 : f32
    %8 = vector.broadcast %cst_5 : f32 to vector<8x128xf32>
    %9 = arith.addf %8, %7 : vector<8x128xf32>
    %10 = arith.divf %8, %9 : vector<8x128xf32>
    %11 = vector.extract_strided_slice %10 {offsets = [0, 0], sizes = [8, 32], strides = [1, 1]} : vector<8x128xf32> to vector<8x32xf32>
    %12 = vector.extract_strided_slice %10 {offsets = [0, 32], sizes = [8, 32], strides = [1, 1]} : vector<8x128xf32> to vector<8x32xf32>
    %13 = vector.extract_strided_slice %10 {offsets = [0, 96], sizes = [8, 32], strides = [1, 1]} : vector<8x128xf32> to vector<8x32xf32>
    %14 = vector.extract_strided_slice %5 {offsets = [0, 64], sizes = [8, 32], strides = [1, 1]} : vector<8x128xf32> to vector<8x32xf32>
    %15 = math.tanh %14 : vector<8x32xf32>
    %c0_6 = arith.constant 0 : index
    %c0_7 = arith.constant 0 : index
    %16 = vector.load %arg2[%c0_6, %c0_7] : memref<8x32xf32, #tpu.memory_space<vmem>>, vector<8x32xf32>
    %17 = arith.mulf %12, %16 : vector<8x32xf32>
    %18 = arith.mulf %11, %15 : vector<8x32xf32>
    %19 = arith.addf %17, %18 : vector<8x32xf32>
    %20 = math.tanh %19 : vector<8x32xf32>
    %21 = arith.mulf %13, %20 : vector<8x32xf32>
    %22 = tpu.concatenate %21, %19 in 1 : vector<8x32xf32>, vector<8x32xf32> -> vector<8x64xf32>
    %c0_8 = arith.constant 0 : index
    %c0_9 = arith.constant 0 : index
    %23 = vector.load %arg5[%c0_8, %c0_9] : memref<8x64xf32, #tpu.memory_space<vmem>>, vector<8x64xf32>
    tpu.vector_store %arg5[%c0_8, %c0_9], %22 {strides = array<i32>} : memref<8x64xf32, #tpu.memory_space<vmem>>, vector<8x64xf32>,
    return
  }
  func.func @transform_0(%arg0: i32) -> (i32, i32) {
    %c0_i32 = arith.constant 0 : i32
    %c0_i32_0 = arith.constant 0 : i32
    return %arg0, %c0_i32 : i32, i32
  }
  func.func @transform_1(%arg0: i32) -> (i32, i32) {
    %c0_i32 = arith.constant 0 : i32
    %c0_i32_0 = arith.constant 0 : i32
    return %arg0, %c0_i32 : i32, i32
  }
  func.func @transform_2(%arg0: i32) -> (i32, i32) {
    %c0_i32 = arith.constant 0 : i32
    %c0_i32_0 = arith.constant 0 : i32
    %c0_i32_1 = arith.constant 0 : i32
    return %c0_i32, %c0_i32_0 : i32, i32
  }
  func.func @transform_3(%arg0: i32) -> (i32, i32) {
    %c0_i32 = arith.constant 0 : i32
    %c0_i32_0 = arith.constant 0 : i32
    %c0_i32_1 = arith.constant 0 : i32
    return %c0_i32, %c0_i32_0 : i32, i32
  }
  func.func @transform_4(%arg0: i32) -> (i32, i32) {
    %c0_i32 = arith.constant 0 : i32
    %c0_i32_0 = arith.constant 0 : i32
    return %arg0, %c0_i32 : i32, i32
  }
}

</mosaic_0001>

<llo_original>
// kernel: tpu_custom_call.1
$region0: #{tpu_custom_call.1}
  #allocation0 [shape = 'u32[]', space=smem, size = 0x4, offset = 0x4, fixed_abs, tag = 'smem constant byte address 0x4 - core index']
  #allocation1 [shape = 'u32[72,128]{1,0:T(1,128)}', space=vmem, size = 0x9000, scoped, tag = 'internal scratch']
  %s0 = inlined_call_operand.hbm [shape: f32[8,64], index: 0, kind: input, shape index: {}]
  %s1 = inlined_call_operand.hbm [shape: f32[8,32], index: 1, kind: input, shape index: {}]
  %s2 = inlined_call_operand.hbm [shape: f32[64,128], index: 2, kind: input, shape index: {}]
  %s3 = inlined_call_operand.vmem [shape: f32[1,128], index: 3, kind: input, shape index: {}]
  %s4 = inlined_call_operand.hbm [shape: f32[8,64], index: 4, kind: output, shape index: {}]
  %s5 = sld [smem:[#allocation0]]
  $region38: #{tpu_custom_call.1} parent=0
    _
  %s7 = ssub.s32 1, %s5
  %s8 = scalar_select 0, %s7, %s5
  $region1: #{tpu_custom_call.1} parent=0
    #allocation2 [shape = 'u8[4096]{0}', space=vmem, size = 0x1000, scoped, tag = 'input window, operand 0, single buffered']
    #allocation3 [shape = 's32[1]{0}', space=sflag, size = 0x4, scoped, tag = 'scoped memory for tpu_custom_call.1']
    #allocation4 [shape = 's32[1]{0}', space=sflag, size = 0x4, scoped, tag = 'scoped memory for tpu_custom_call.1']
    #allocation5 [shape = 'u8[4096]{0}', space=vmem, size = 0x1000, scoped, tag = 'input window, operand 1, single buffered']
    #allocation6 [shape = 's32[1]{0}', space=sflag, size = 0x4, scoped, tag = 'scoped memory for tpu_custom_call.1']
    #allocation7 [shape = 'u8[32768]{0}', space=vmem, size = 0x8000, scoped, tag = 'input window, operand 2, single buffered']
    #allocation8 [shape = 'u8[4096]{0}', space=vmem, size = 0x1000, scoped, tag = 'output window, operand 0, single buffered']
    %9 = vsyncpa [#allocation3], 0
    %10 = vsyncpa [#allocation6], 0
    %11 = vsyncpa [#allocation4], 0
    // Predicated region
    $region2: #{tpu_custom_call.1} parent=1 // pred_check
      _
    $region3: #{tpu_custom_call.1} parent=1 // pred_check_branch
      %13 = sbr.rel (0) target = $region5
    $region4: #{tpu_custom_call.1} parent=1 // pred_region
      %15 = vsyncadd [#allocation3], 0
      %s17 = sshll.u32 %s0, 4
      %s18 = int_to_ptr.hbm [resolvable:$true] %s17
      %s19 = sshll.u32 [#allocation2], 4
      %s20 = int_to_ptr.vmem [resolvable:$true] %s19
      %22 = dma.hbm_to_vmem [thread:$0]  %s18, 128, %s20, [#allocation3]
    $region5: #{tpu_custom_call.1} parent=1 // pred_fallthru
      _
    // Predicated region
    $region6: #{tpu_custom_call.1} parent=1 // pred_check
      _
    $region7: #{tpu_custom_call.1} parent=1 // pred_check_branch
      %24 = sbr.rel (0) target = $region9
    $region8: #{tpu_custom_call.1} parent=1 // pred_region
      %26 = vsyncadd [#allocation6], 0
      %s28 = sshll.u32 %s1, 4
      %s29 = int_to_ptr.hbm [resolvable:$true] %s28
      %s30 = sshll.u32 [#allocation5], 4
      %s31 = int_to_ptr.vmem [resolvable:$true] %s30
      %33 = dma.hbm_to_vmem [thread:$0]  %s29, 128, %s31, [#allocation6]
    $region9: #{tpu_custom_call.1} parent=1 // pred_fallthru
      _
    // Predicated region
    $region10: #{tpu_custom_call.1} parent=1 // pred_check
      _
    $region11: #{tpu_custom_call.1} parent=1 // pred_check_branch
      %35 = sbr.rel (0) target = $region13
    $region12: #{tpu_custom_call.1} parent=1 // pred_region
      %37 = vsyncadd [#allocation6], 0
      %s38 = sshll.u32 %s2, 4
      %s39 = int_to_ptr.hbm [resolvable:$true] %s38
      %s40 = sshll.u32 [#allocation7], 4
      %s41 = int_to_ptr.vmem [resolvable:$true] %s40
      %46 = dma.hbm_to_vmem [thread:$0]  %s39, 1024, %s41, [#allocation6], 128, 128, 8
    $region13: #{tpu_custom_call.1} parent=1 // pred_fallthru
      _
    // Predicated region
    $region14: #{tpu_custom_call.1} parent=1 // pred_check
      _
    $region15: #{tpu_custom_call.1} parent=1 // pred_check_branch
      %48 = sbr.rel (0) target = $region17
    $region16: #{tpu_custom_call.1} parent=1 // pred_region
      _
    $region17: #{tpu_custom_call.1} parent=1 // pred_fallthru
      _
    // Predicated region
    $region18: #{tpu_custom_call.1} parent=1 // pred_check
      _
    $region19: #{tpu_custom_call.1} parent=1 // pred_check_branch
      %50 = sbr.rel (0) target = $region21
    $region20: #{tpu_custom_call.1} parent=1 // pred_region
      %52 = dma.done [#allocation3], 128
    $region21: #{tpu_custom_call.1} parent=1 // pred_fallthru
      _
    // Predicated region
    $region22: #{tpu_custom_call.1} parent=1 // pred_check
      _
    $region23: #{tpu_custom_call.1} parent=1 // pred_check_branch
      %54 = sbr.rel (0) target = $region25
    $region24: #{tpu_custom_call.1} parent=1 // pred_region
      %56 = dma.done [#allocation6], 128
    $region25: #{tpu_custom_call.1} parent=1 // pred_fallthru
      _
    // Predicated region
    $region26: #{tpu_custom_call.1} parent=1 // pred_check
      _
    $region27: #{tpu_custom_call.1} parent=1 // pred_check_branch
      %58 = sbr.rel (0) target = $region29
    $region28: #{tpu_custom_call.1} parent=1 // pred_region
      %60 = dma.done [#allocation6], 1024
    $region29: #{tpu_custom_call.1} parent=1 // pred_fallthru
      _
    %v61 = vld [vmem:[#allocation2] sm:$0xff]
    %v62 = vld [vmem:[#allocation7] sm:$0xff]
    %v63 = vld [vmem:[#allocation7 + $0x8] sm:$0xff]
    %v64 = vld [vmem:[#allocation7 + $0x10] sm:$0xff]
    %v65 = vld [vmem:[#allocation7 + $0x18] sm:$0xff]
    %v66 = vld [vmem:[#allocation7 + $0x20] sm:$0xff]
    %v67 = vld [vmem:[#allocation7 + $0x28] sm:$0xff]
    %v68 = vld [vmem:[#allocation7 + $0x30] sm:$0xff]
    %v69 = vld [vmem:[#allocation7 + $0x38] sm:$0xff]
    %v70 = vld [vmem:[%s3] sm:$0x1]
    %v72 = vperm.slane %v70, 0
    %vm74 = vcmask 523264
    %v76 = vsel %vm74, %v61, 0
    %78 = vmatpush.msra.mxu0 0.0
    %79 = vmatpush.msra.mxu0 0.0
    %80 = vmatpush.msra.mxu0 0.0
    %81 = vmatpush.msra.mxu0 0.0
    %82 = vmatpush.msra.mxu0 0.0
    %83 = vmatpush.msra.mxu0 0.0
    %84 = vmatpush.msra.mxu0 0.0
    %85 = vmatpush.msra.mxu0 0.0
    %86 = vmatpush.msra.mxu0 %v69
    %87 = vmatpush.msra.mxu0 %v68
    %88 = vmatpush.msra.mxu0 %v67
    %89 = vmatpush.msra.mxu0 %v66
    %90 = vmatpush.msra.mxu0 %v65
    %91 = vmatpush.msra.mxu0 %v64
    %92 = vmatpush.msra.mxu0 %v63
    %93 = vmatpush.msra.mxu0 %v62
    %94 = vmatmul.f32.gmra.mxu0 %v76
    %v95 = vpop.f32.mrf.mxu0
    %v96 = vadd.f32 %v72, %v95
    %97 = vdwg.mxu0
    %v98 = vxor.u32 %v96, 2147483648
    %v99 = vmul.f32 %v98, 1.442695
    %v100 = vpow.pop %v99
    %v101 = vadd.f32 %v100, 1.0
    %v102 = vrcp.pop %v101
    %v103 = vmul.f32 %v101, %v102
    %v104 = vsub.f32 1.0, %v103
    %v105 = vmul.f32 %v102, %v104
    %v106 = vadd.f32 %v102, %v105
    %vm107 = vweird.f32 %v101
    %vm108 = vweird.f32 %v102
    %vm109 = vmor %vm107, %vm108
    %v110 = vsel %vm109, %v102, %v106
    %v111 = vand.u32 2147483647, %v101
    %vm112 = vcmp.eq.f32.partialorder %v111, 8.507059e+37
    %v113 = vand.u32 %v101, 2147483648
    %v114 = vor.u32 1.1754944e-38, %v113
    %v115 = vsel %vm112, %v114, %v110
    %v116 = vmul.f32 1.0, %v115
    %v117 = vtanh.pop %v96
    %v118 = vld [vmem:[#allocation5] sm:$0xff]
    %120 = vrot.lane.b32.xlu0 %v118, 32
    %v121 = vpop.permute.xlu0 %120
    %v123 = vmul.f32 %v116, %v121
    %125 = vrot.lane.b32.xlu0 %v117, 64
    %v126 = vpop.permute.xlu0 %125
    %v128 = vmul.f32 %v116, %v126
    %130 = vrot.lane.b32.xlu0 %v128, 32
    %v131 = vpop.permute.xlu0 %130
    %v133 = vadd.f32 %v123, %v131
    %v134 = vtanh.pop %v133
    %136 = vrot.lane.b32.xlu0 %v134, 64
    %v137 = vpop.permute.xlu0 %136
    %v139 = vmul.f32 %v116, %v137
    %141 = vrot.lane.b32.xlu0 %v139, 32
    %v142 = vpop.permute.xlu0 %141
    %vm144 = vcmask 261120
    %v145 = vsel %vm144, %v142, %v133
    %146 = vst.msk [vmem:[#allocation8] sm:$0xff] %vm74, %v145
    // Predicated region
    $region30: #{tpu_custom_call.1} parent=1 // pred_check
      _
    $region31: #{tpu_custom_call.1} parent=1 // pred_check_branch
      %148 = sbr.rel (0) target = $region33
    $region32: #{tpu_custom_call.1} parent=1 // pred_region
      %150 = vsyncadd [#allocation4], 0
      %s152 = sshll.u32 [#allocation8], 4
      %s153 = int_to_ptr.vmem [resolvable:$true] %s152
      %s154 = sshll.u32 %s4, 4
      %s155 = int_to_ptr.hbm [resolvable:$true] %s154
      %157 = dma.vmem_to_hbm [thread:$0]  %s153, 128, %s155, [#allocation4]
    $region33: #{tpu_custom_call.1} parent=1 // pred_fallthru
      _
    // Predicated region
    $region34: #{tpu_custom_call.1} parent=1 // pred_check
      _
    $region35: #{tpu_custom_call.1} parent=1 // pred_check_branch
      %159 = sbr.rel (0) target = $region37
    $region36: #{tpu_custom_call.1} parent=1 // pred_region
      %161 = dma.done [#allocation4], 128
    $region37: #{tpu_custom_call.1} parent=1 // pred_fallthru
      _
    %162 = vsyncpa [#allocation3], 1
    %163 = vsyncpa [#allocation6], 1
    %164 = vsyncpa [#allocation4], 1

</llo_original>
